<compile_context>
chip_gen: v7x
topology: tpu7x:2x2x1
jax: 0.10.0
libtpu: 0.0.40
codegen_flags: <defaults>
</compile_context>

<pallas_src>
import functools

import numpy as np
import jax
import jax.numpy as jnp
from jax.experimental import pallas as pl
from jax.experimental.pallas import tpu as pltpu


def _label_smoothing_kernel(SIZE, TS,
                            x_ref,      # VMEM (RB, TS) raw logits tile (native dtype)
                            pk_ref,     # VMEM (RB, TS) int8 packed masks/labels
                            sig_ref,    # VMEM (RB, TS) out: sigmoid(x)
                            part_ref,   # VMEM (1, 4, TS) out: per-group per-lane partials
                            a_bce1, a_bce2, a_abs, a_sq):   # VMEM (1, TS) scratch
    i = pl.program_id(1)

    @pl.when(i == 0)
    def _():
        for a in (a_bce1, a_bce2, a_abs, a_sq):
            a[...] = jnp.zeros_like(a)

    x = x_ref[...].astype(jnp.float32)             # upcast per tile (free on VPU)
    e = jnp.exp(-x)                                # transcendental #1 (EUP)
    p = pl.reciprocal(1.0 + e, approx=True)        # sigmoid(x) on the EUP slot
    sig_ref[...] = p.astype(sig_ref.dtype)

    # BCELoss-style clamped logs from a single (exact) log:
    #   log sigmoid(x) = -log(1 + e);  log(1 - sigmoid(x)) = log sigmoid(x) - x
    ls = -jnp.log(1.0 + e)                         # transcendental #2 (EUP)
    neg_log_p = jnp.minimum(-ls, 100.0)            # = -max(log p, -100)
    neg_log_1mp = jnp.minimum(x - ls, 100.0)       # = -max(log(1-p), -100)

    pk = pk_ref[...].astype(jnp.int32)
    m1 = (pk & 1) > 0                              # y_seq  > 0
    y1 = (pk & 2) > 0                              # y_corr label bit
    m2 = (pk & 4) > 0                              # X_seq  > 0
    y2 = (pk & 8) > 0                              # X_corr label bit
    mv = (pk & 16) > 0                             # timestep > 0 (waviness diff valid)

    # Binary labels -> BCE is just a select between the two log terms.
    bce1 = jnp.where(m1, jnp.where(y1, neg_log_p, neg_log_1mp), 0.0)
    bce2 = jnp.where(m2, jnp.where(y2, neg_log_p, neg_log_1mp), 0.0)

    # Waviness: diff over consecutive timesteps == lane roll by SIZE inside a
    # row (each row is one whole sequence, timestep-major on the lane axis).
    prev = pltpu.roll(p, shift=SIZE, axis=1) if SIZE < TS else p
    d = jnp.where(mv, p - prev, 0.0)

    # Per-tile partials: sublane-reduce only; lane reduces / divides / lambda
    # weighting happen in the wrapper on the tiny (G, 4, TS) partials output.
    a_bce1[...] += jnp.sum(bce1, axis=0, keepdims=True)
    a_bce2[...] += jnp.sum(bce2, axis=0, keepdims=True)
    a_abs[...] += jnp.sum(jnp.abs(d), axis=0, keepdims=True)
    a_sq[...] += jnp.sum(d * d, axis=0, keepdims=True)

    @pl.when(i == pl.num_programs(1) - 1)
    def _():
        part_ref[:, 0, :] = a_bce1[...]
        part_ref[:, 1, :] = a_bce2[...]
        part_ref[:, 2, :] = a_abs[...]
        part_ref[:, 3, :] = a_sq[...]


def _pick_seqs_per_tile(B, TS, max_seqs, itemsize):
    """Whole sequences per tile: divides B, %8==0 (or == B), preferring %32==0
    (clean int8 sublane packing), capped so the logits tile stays ~<=4 MiB."""
    byte_cap = max(1, (4 * 1024 * 1024) // (TS * itemsize))
    cap = max(1, min(max_seqs, byte_cap))
    cands = [s for s in range(1, B + 1)
             if B % s == 0 and (s % 8 == 0 or s == B)]
    fitting = [s for s in cands if s <= cap]
    if fitting:
        pref = [s for s in fitting if s % 32 == 0]
        return max(pref) if pref else max(fitting)
    # Fallback: smallest legal tile, with a hard VMEM guard (v7x has only
    # 64 MiB / TC) instead of silently taking rb = B.
    rb = min(cands)
    footprint = 2 * rb * TS * (itemsize + 1 + 4)   # x + packed + sig, double-buffered
    if footprint > 40 * 1024 * 1024:
        raise ValueError(
            f"No batch tiling fits VMEM (B={B}, needs ~{footprint} bytes); "
            "pad the batch to a multiple of 8.")
    return rb


def pack_labels_and_counts(y_seq_batch, y_corr_batch, X_batch, size):
    """Bit-pack the four binary mask/label planes (+ waviness validity) into one
    int8 plane and compute the two mask counts.  If the labels are constant
    across training steps, call this once and reuse the result (it reads
    ~16 B/elem of f32 planes, the bulk of this op's HBM traffic)."""
    B, T, _ = y_seq_batch.shape
    TS = T * size
    yseq = (y_seq_batch > 0).reshape(B, TS)
    ycorr = (y_corr_batch > 0).reshape(B, TS)
    xseq = (X_batch[:, :, :size] > 0).reshape(B, TS)
    xcorr = (X_batch[:, :, size:] > 0).reshape(B, TS)
    tvalid = jnp.broadcast_to(jnp.arange(TS) >= size, (B, TS))  # timestep > 0
    # TODO(synk): bit-packing is exact only for binary {0,1} correctness labels;
    # pass separate bf16 planes instead if real-valued labels are ever needed.
    packed = (yseq.astype(jnp.int8)
              | (ycorr.astype(jnp.int8) << 1)
              | (xseq.astype(jnp.int8) << 2)
              | (xcorr.astype(jnp.int8) << 3)
              | (tvalid.astype(jnp.int8) << 4))
    cnt1 = jnp.sum(yseq, dtype=jnp.float32)
    cnt2 = jnp.sum(xseq, dtype=jnp.float32)
    return packed, cnt1, cnt2


def label_smoothing_forward(x, y_seq_batch, y_corr_batch, X_batch,
                            lambda_o, lambda_w1, lambda_w2,
                            max_seqs_per_tile=512,
                            num_row_groups=2,
                            sigmoid_out_dtype=jnp.float32,
                            precomputed_labels=None):
    """Returns (loss, target_logits, target_labels) like the torch module."""
    B, T, size = y_seq_batch.shape
    N, size_x = x.shape
    assert size_x == size and N == B * T
    assert X_batch.shape == (B, T, 2 * size)
    TS = T * size

    # ---- plain-JAX glue (fused by XLA) ----
    x2d = x.reshape(B, TS)                         # native dtype, no extra copy
    if precomputed_labels is None:
        packed, cnt1, cnt2 = pack_labels_and_counts(
            y_seq_batch, y_corr_batch, X_batch, size)
    else:
        packed, cnt1, cnt2 = precomputed_labels
    lam = jnp.maximum(
        jnp.array([lambda_o, lambda_w1, lambda_w2], dtype=jnp.float32), 0.0)

    rb = _pick_seqs_per_tile(B, TS, max_seqs_per_tile, jnp.dtype(x.dtype).itemsize)
    num_tiles = B // rb
    g = max(1, min(num_row_groups, num_tiles))
    while num_tiles % g:
        g -= 1
    inner = num_tiles // g
    grid = (g, inner)

    kernel = functools.partial(_label_smoothing_kernel, size, TS)

    sig2d, partials = pl.pallas_call(
        kernel,
        grid=grid,
        in_specs=[
            pl.BlockSpec((rb, TS), lambda gi, i: (gi * inner + i, 0)),   # logits
            pl.BlockSpec((rb, TS), lambda gi, i: (gi * inner + i, 0)),   # packed int8
        ],
        out_specs=(
            pl.BlockSpec((rb, TS), lambda gi, i: (gi * inner + i, 0)),   # sigmoid(x)
            pl.BlockSpec((1, 4, TS), lambda gi, i: (gi, 0, 0)),          # per-group partials
        ),
        out_shape=(
            jax.ShapeDtypeStruct((B, TS), sigmoid_out_dtype),
            jax.ShapeDtypeStruct((g, 4, TS), jnp.float32),
        ),
        scratch_shapes=[pltpu.VMEM((1, TS), jnp.float32)] * 4,
        compiler_params=pltpu.CompilerParams(
            # Outer axis: independent row-groups (megacore-shardable on v7x).
            # Inner axis carries the per-group reduction -> "arbitrary".
            dimension_semantics=("parallel", "arbitrary"),
            vmem_limit_bytes=48 * 1024 * 1024,
        ),
    )(x2d, packed)

    # Tiny final combine in XLA: lane reduces, divides, lambda weighting.
    sums = jnp.sum(partials, axis=(0, 2))          # (4,)
    denom_wav = jnp.float32(N * size)
    loss = (sums[0] / cnt1
            + lam[0] * (sums[1] / cnt2)
            + lam[1] * (sums[2] / denom_wav)
            + lam[2] * (sums[3] / denom_wav))

    sig_x = sig2d.reshape(N, size)

    # torch.masked_select has a data-dependent output shape -> numpy glue on
    # concrete arrays.
    # TODO(synk): this forces a device->host sync; return the dense sigmoid +
    # mask instead if the caller can defer the select.
    sig_np = np.asarray(sig_x).astype(np.float32)
    mask_np = np.asarray(y_seq_batch.reshape(N, size)) > 0
    target_logits = sig_np[mask_np]
    target_labels = np.asarray(y_corr_batch.reshape(N, size))[mask_np].astype(np.float32)
    return loss, target_logits, target_labels


def _reference_loss(x, y_seq, y_corr, X_batch, lo, lw1, lw2):
    """Faithful (torch-style) reference in plain JAX for validation."""
    B, T, size = y_seq.shape
    N = B * T
    p = jax.nn.sigmoid(x.astype(jnp.float32))
    logp = jnp.maximum(jnp.log(p), -100.0)
    log1mp = jnp.maximum(jnp.log(1.0 - p), -100.0)

    def mbce(mask, lab):
        bce = -(lab * logp + (1.0 - lab) * log1mp)
        return jnp.sum(jnp.where(mask, bce, 0.0)) / jnp.sum(mask.astype(jnp.float32))

    ys = y_seq.reshape(-1, size)
    yc = y_corr.reshape(-1, size)
    cs = X_batch[:, :, :size].reshape(-1, size)
    cc = X_batch[:, :, size:].reshape(-1, size)
    l1 = mbce(ys > 0, yc.astype(jnp.float32))
    l2 = jnp.maximum(lo, 0.0) * mbce(cs > 0, cc.astype(jnp.float32))
    preds = p.reshape(B, T, size)
    d = preds[:, 1:, :] - preds[:, :-1, :]
    l3 = jnp.maximum(lw1, 0.0) * jnp.sum(jnp.abs(d)) / N / size
    l4 = jnp.maximum(lw2, 0.0) * jnp.sum(d * d) / N / size
    return l1 + l2 + l3 + l4


if __name__ == "__main__":
    B, T, SIZE = 128, 8, 32          # batch, max_step, vocab/skill size
    N = B * T

    key = jax.random.PRNGKey(0)
    k1, k2, k3, k4, k5 = jax.random.split(key, 5)

    x = jax.random.normal(k1, (N, SIZE), dtype=jnp.float32)             # raw logits
    y_seq_batch = (jax.random.uniform(k2, (B, T, SIZE)) > 0.5).astype(jnp.float32)
    y_corr_batch = (jax.random.uniform(k3, (B, T, SIZE)) > 0.5).astype(jnp.float32)
    xb_seq = (jax.random.uniform(k4, (B, T, SIZE)) > 0.5).astype(jnp.float32)
    xb_corr = (jax.random.uniform(k5, (B, T, SIZE)) > 0.5).astype(jnp.float32)
    X_batch = jnp.concatenate([xb_seq, xb_corr], axis=-1)               # (B, T, 2*SIZE)

    # deterministic lambda "parameters" (module-level Variables in the torch code)
    lambda_o, lambda_w1, lambda_w2 = 0.5, 0.1, 0.2

    # Small tile cap so the demo exercises a multi-step grid with cross-tile
    # accumulation AND a parallel group split (grid = (2, 2) here).
    loss, target_logits, target_labels = label_smoothing_forward(
        x, y_seq_batch, y_corr_batch, X_batch, lambda_o, lambda_w1, lambda_w2,
        max_seqs_per_tile=32, num_row_groups=2)
    jax.block_until_ready(loss)

    ref = _reference_loss(x, y_seq_batch, y_corr_batch, X_batch,
                          jnp.float32(lambda_o), jnp.float32(lambda_w1),
                          jnp.float32(lambda_w2))
    # 2e-4 tolerance absorbs (a) the numerically better log-sigmoid formulation
    # vs. the reference's log(1 - sigmoid(x)), (b) the EUP approx reciprocal in
    # the sigmoid (only affects the waviness terms), (c) summation order.
    np.testing.assert_allclose(np.asarray(loss), np.asarray(ref),
                               rtol=2e-4, atol=2e-4)
    assert target_logits.shape == target_labels.shape

    print("KERNEL_OK")
</pallas_src>

<mosaic_0001>
module attributes {stable_mosaic.version = 11 : i64} {
  func.func @_label_smoothing_kernel(%arg0: i32, %arg1: i32, %arg2: memref<32x256xf32, #tpu.memory_space<vmem>>, %arg3: memref<32x256xi8, #tpu.memory_space<vmem>>, %arg4: memref<32x256xf32, #tpu.memory_space<vmem>>, %arg5: memref<1x4x256xf32, #tpu.memory_space<vmem>>, %arg6: memref<1x256xf32, #tpu.memory_space<vmem>>, %arg7: memref<1x256xf32, #tpu.memory_space<vmem>>, %arg8: memref<1x256xf32, #tpu.memory_space<vmem>>, %arg9: memref<1x256xf32, #tpu.memory_space<vmem>>) attributes {dimension_semantics = [#tpu.dimension_semantics<parallel>, #tpu.dimension_semantics<arbitrary>], iteration_bounds = array<i64: 2, 2>, scalar_prefetch = 0 : i64, scratch_operands = 4 : i64, tpu.core_type = #tpu.core_type<tc>, window_params = [{transform_indices = @transform_0, window_bounds = array<i64: 32, 256>}, {transform_indices = @transform_1, window_bounds = array<i64: 32, 256>}, {transform_indices = @transform_2, window_bounds = array<i64: 32, 256>}, {transform_indices = @transform_3, window_bounds = array<i64: 1, 4, 256>}]} {
    %c0_i32 = arith.constant 0 : i32
    %0 = arith.cmpi eq, %arg1, %c0_i32 : i32
    %1 = arith.extui %0 : i1 to i32
    %c0_i32_0 = arith.constant 0 : i32
    %2 = arith.cmpi ne, %1, %c0_i32_0 : i32
    scf.if %2 {
      %cst_42 = arith.constant 0.000000e+00 : f32
      %80 = vector.broadcast %cst_42 : f32 to vector<1x256xf32>
      %c0_43 = arith.constant 0 : index
      %c0_44 = arith.constant 0 : index
      %81 = vector.load %arg6[%c0_43, %c0_44] : memref<1x256xf32, #tpu.memory_space<vmem>>, vector<1x256xf32>
      tpu.vector_store %arg6[%c0_43, %c0_44], %80 {strides = array<i32>} : memref<1x256xf32, #tpu.memory_space<vmem>>, vector<1x256xf32>,
      %cst_45 = arith.constant 0.000000e+00 : f32
      %82 = vector.broadcast %cst_45 : f32 to vector<1x256xf32>
      %c0_46 = arith.constant 0 : index
      %c0_47 = arith.constant 0 : index
      %83 = vector.load %arg7[%c0_46, %c0_47] : memref<1x256xf32, #tpu.memory_space<vmem>>, vector<1x256xf32>
      tpu.vector_store %arg7[%c0_46, %c0_47], %82 {strides = array<i32>} : memref<1x256xf32, #tpu.memory_space<vmem>>, vector<1x256xf32>,
      %cst_48 = arith.constant 0.000000e+00 : f32
      %84 = vector.broadcast %cst_48 : f32 to vector<1x256xf32>
      %c0_49 = arith.constant 0 : index
      %c0_50 = arith.constant 0 : index
      %85 = vector.load %arg8[%c0_49, %c0_50] : memref<1x256xf32, #tpu.memory_space<vmem>>, vector<1x256xf32>
      tpu.vector_store %arg8[%c0_49, %c0_50], %84 {strides = array<i32>} : memref<1x256xf32, #tpu.memory_space<vmem>>, vector<1x256xf32>,
      %cst_51 = arith.constant 0.000000e+00 : f32
      %86 = vector.broadcast %cst_51 : f32 to vector<1x256xf32>
      %c0_52 = arith.constant 0 : index
      %c0_53 = arith.constant 0 : index
      %87 = vector.load %arg9[%c0_52, %c0_53] : memref<1x256xf32, #tpu.memory_space<vmem>>, vector<1x256xf32>
      tpu.vector_store %arg9[%c0_52, %c0_53], %86 {strides = array<i32>} : memref<1x256xf32, #tpu.memory_space<vmem>>, vector<1x256xf32>,
    } else {
    }
    %c0 = arith.constant 0 : index
    %c0_1 = arith.constant 0 : index
    %3 = vector.load %arg2[%c0, %c0_1] : memref<32x256xf32, #tpu.memory_space<vmem>>, vector<32x256xf32>
    %cst = arith.constant 0.000000e+00 : f32
    %4 = vector.broadcast %cst : f32 to vector<32x256xf32>
    %5 = arith.subf %4, %3 : vector<32x256xf32>
    %6 = math.exp %5 : vector<32x256xf32>
    %cst_2 = arith.constant 1.000000e+00 : f32
    %7 = vector.broadcast %cst_2 : f32 to vector<32x256xf32>
    %8 = arith.addf %7, %6 : vector<32x256xf32>
    %9 = tpu.reciprocal %8 {approx = true} : vector<32x256xf32> -> vector<32x256xf32>
    %c0_3 = arith.constant 0 : index
    %c0_4 = arith.constant 0 : index
    %10 = vector.load %arg4[%c0_3, %c0_4] : memref<32x256xf32, #tpu.memory_space<vmem>>, vector<32x256xf32>
    tpu.vector_store %arg4[%c0_3, %c0_4], %9 {strides = array<i32>} : memref<32x256xf32, #tpu.memory_space<vmem>>, vector<32x256xf32>,
    %cst_5 = arith.constant 1.000000e+00 : f32
    %11 = vector.broadcast %cst_5 : f32 to vector<32x256xf32>
    %12 = arith.addf %11, %6 : vector<32x256xf32>
    %13 = math.log %12 : vector<32x256xf32>
    %cst_6 = arith.constant 0.000000e+00 : f32
    %14 = vector.broadcast %cst_6 : f32 to vector<32x256xf32>
    %15 = arith.subf %14, %13 : vector<32x256xf32>
    %cst_7 = arith.constant 0.000000e+00 : f32
    %16 = vector.broadcast %cst_7 : f32 to vector<32x256xf32>
    %17 = arith.subf %16, %15 : vector<32x256xf32>
    %cst_8 = arith.constant 1.000000e+02 : f32
    %18 = vector.broadcast %cst_8 : f32 to vector<32x256xf32>
    %19 = arith.minimumf %17, %18 : vector<32x256xf32>
    %20 = arith.subf %3, %15 : vector<32x256xf32>
    %cst_9 = arith.constant 1.000000e+02 : f32
    %21 = vector.broadcast %cst_9 : f32 to vector<32x256xf32>
    %22 = arith.minimumf %20, %21 : vector<32x256xf32>
    %c0_10 = arith.constant 0 : index
    %c0_11 = arith.constant 0 : index
    %23 = vector.load %arg3[%c0_10, %c0_11] : memref<32x256xi8, #tpu.memory_space<vmem>>, vector<32x256xi8>
    %24 = arith.extsi %23 : vector<32x256xi8> to vector<32x256xi32>
    %c1_i32 = arith.constant 1 : i32
    %25 = vector.broadcast %c1_i32 : i32 to vector<32x256xi32>
    %26 = arith.andi %24, %25 : vector<32x256xi32>
    %c0_i32_12 = arith.constant 0 : i32
    %27 = vector.broadcast %c0_i32_12 : i32 to vector<32x256xi32>
    %28 = arith.cmpi sgt, %26, %27 : vector<32x256xi32>
    %c2_i32 = arith.constant 2 : i32
    %29 = vector.broadcast %c2_i32 : i32 to vector<32x256xi32>
    %30 = arith.andi %24, %29 : vector<32x256xi32>
    %c0_i32_13 = arith.constant 0 : i32
    %31 = vector.broadcast %c0_i32_13 : i32 to vector<32x256xi32>
    %32 = arith.cmpi sgt, %30, %31 : vector<32x256xi32>
    %c4_i32 = arith.constant 4 : i32
    %33 = vector.broadcast %c4_i32 : i32 to vector<32x256xi32>
    %34 = arith.andi %24, %33 : vector<32x256xi32>
    %c0_i32_14 = arith.constant 0 : i32
    %35 = vector.broadcast %c0_i32_14 : i32 to vector<32x256xi32>
    %36 = arith.cmpi sgt, %34, %35 : vector<32x256xi32>
    %c8_i32 = arith.constant 8 : i32
    %37 = vector.broadcast %c8_i32 : i32 to vector<32x256xi32>
    %38 = arith.andi %24, %37 : vector<32x256xi32>
    %c0_i32_15 = arith.constant 0 : i32
    %39 = vector.broadcast %c0_i32_15 : i32 to vector<32x256xi32>
    %40 = arith.cmpi sgt, %38, %39 : vector<32x256xi32>
    %c16_i32 = arith.constant 16 : i32
    %41 = vector.broadcast %c16_i32 : i32 to vector<32x256xi32>
    %42 = arith.andi %24, %41 : vector<32x256xi32>
    %c0_i32_16 = arith.constant 0 : i32
    %43 = vector.broadcast %c0_i32_16 : i32 to vector<32x256xi32>
    %44 = arith.cmpi sgt, %42, %43 : vector<32x256xi32>
    %45 = arith.select %32, %19, %22 : vector<32x256xi1>, vector<32x256xf32>
    %cst_17 = arith.constant 0.000000e+00 : f32
    %46 = vector.broadcast %cst_17 : f32 to vector<32x256xf32>
    %47 = arith.select %28, %45, %46 : vector<32x256xi1>, vector<32x256xf32>
    %48 = arith.select %40, %19, %22 : vector<32x256xi1>, vector<32x256xf32>
    %cst_18 = arith.constant 0.000000e+00 : f32
    %49 = vector.broadcast %cst_18 : f32 to vector<32x256xf32>
    %50 = arith.select %36, %48, %49 : vector<32x256xi1>, vector<32x256xf32>
    %c32_i32 = arith.constant 32 : i32
    %51 = tpu.dynamic_rotate %9 by %c32_i32 dim 1 : vector<32x256xf32>, i32 -> vector<32x256xf32>
    %52 = arith.subf %9, %51 : vector<32x256xf32>
    %cst_19 = arith.constant 0.000000e+00 : f32
    %53 = vector.broadcast %cst_19 : f32 to vector<32x256xf32>
    %54 = arith.select %44, %52, %53 : vector<32x256xi1>, vector<32x256xf32>
    %c0_20 = arith.constant 0 : index
    %c0_21 = arith.constant 0 : index
    %55 = vector.load %arg6[%c0_20, %c0_21] : memref<1x256xf32, #tpu.memory_space<vmem>>, vector<1x256xf32>
    %cst_22 = arith.constant dense<0.000000e+00> : vector<256xf32>
    %56 = vector.multi_reduction <add>, %47, %cst_22 [0] : vector<32x256xf32> to vector<256xf32>
    %57 = vector.shape_cast %56 : vector<256xf32> to vector<1x256xf32>
    %58 = arith.addf %55, %57 : vector<1x256xf32>
    %c0_23 = arith.constant 0 : index
    %c0_24 = arith.constant 0 : index
    %59 = vector.load %arg6[%c0_23, %c0_24] : memref<1x256xf32, #tpu.memory_space<vmem>>, vector<1x256xf32>
    tpu.vector_store %arg6[%c0_23, %c0_24], %58 {strides = array<i32>} : memref<1x256xf32, #tpu.memory_space<vmem>>, vector<1x256xf32>,
    %c0_25 = arith.constant 0 : index
    %c0_26 = arith.constant 0 : index
    %60 = vector.load %arg7[%c0_25, %c0_26] : memref<1x256xf32, #tpu.memory_space<vmem>>, vector<1x256xf32>
    %cst_27 = arith.constant dense<0.000000e+00> : vector<256xf32>
    %61 = vector.multi_reduction <add>, %50, %cst_27 [0] : vector<32x256xf32> to vector<256xf32>
    %62 = vector.shape_cast %61 : vector<256xf32> to vector<1x256xf32>
    %63 = arith.addf %60, %62 : vector<1x256xf32>
    %c0_28 = arith.constant 0 : index
    %c0_29 = arith.constant 0 : index
    %64 = vector.load %arg7[%c0_28, %c0_29] : memref<1x256xf32, #tpu.memory_space<vmem>>, vector<1x256xf32>
    tpu.vector_store %arg7[%c0_28, %c0_29], %63 {strides = array<i32>} : memref<1x256xf32, #tpu.memory_space<vmem>>, vector<1x256xf32>,
    %c0_30 = arith.constant 0 : index
    %c0_31 = arith.constant 0 : index
    %65 = vector.load %arg8[%c0_30, %c0_31] : memref<1x256xf32, #tpu.memory_space<vmem>>, vector<1x256xf32>
    %66 = math.absf %54 : vector<32x256xf32>
    %cst_32 = arith.constant dense<0.000000e+00> : vector<256xf32>
    %67 = vector.multi_reduction <add>, %66, %cst_32 [0] : vector<32x256xf32> to vector<256xf32>
    %68 = vector.shape_cast %67 : vector<256xf32> to vector<1x256xf32>
    %69 = arith.addf %65, %68 : vector<1x256xf32>
    %c0_33 = arith.constant 0 : index
    %c0_34 = arith.constant 0 : index
    %70 = vector.load %arg8[%c0_33, %c0_34] : memref<1x256xf32, #tpu.memory_space<vmem>>, vector<1x256xf32>
    tpu.vector_store %arg8[%c0_33, %c0_34], %69 {strides = array<i32>} : memref<1x256xf32, #tpu.memory_space<vmem>>, vector<1x256xf32>,
    %c0_35 = arith.constant 0 : index
    %c0_36 = arith.constant 0 : index
    %71 = vector.load %arg9[%c0_35, %c0_36] : memref<1x256xf32, #tpu.memory_space<vmem>>, vector<1x256xf32>
    %72 = arith.mulf %54, %54 : vector<32x256xf32>
    %cst_37 = arith.constant dense<0.000000e+00> : vector<256xf32>
    %73 = vector.multi_reduction <add>, %72, %cst_37 [0] : vector<32x256xf32> to vector<256xf32>
    %74 = vector.shape_cast %73 : vector<256xf32> to vector<1x256xf32>
    %75 = arith.addf %71, %74 : vector<1x256xf32>
    %c0_38 = arith.constant 0 : index
    %c0_39 = arith.constant 0 : index
    %76 = vector.load %arg9[%c0_38, %c0_39] : memref<1x256xf32, #tpu.memory_space<vmem>>, vector<1x256xf32>
    tpu.vector_store %arg9[%c0_38, %c0_39], %75 {strides = array<i32>} : memref<1x256xf32, #tpu.memory_space<vmem>>, vector<1x256xf32>,
    %c1_i32_40 = arith.constant 1 : i32
    %77 = arith.cmpi eq, %arg1, %c1_i32_40 : i32
    %78 = arith.extui %77 : i1 to i32
    %c0_i32_41 = arith.constant 0 : i32
    %79 = arith.cmpi ne, %78, %c0_i32_41 : i32
    scf.if %79 {
      %c0_42 = arith.constant 0 : index
      %c0_43 = arith.constant 0 : index
      %80 = vector.load %arg6[%c0_42, %c0_43] : memref<1x256xf32, #tpu.memory_space<vmem>>, vector<1x256xf32>
      %c0_44 = arith.constant 0 : index
      %c0_45 = arith.constant 0 : index
      %c0_46 = arith.constant 0 : index
      %81 = vector.load %arg5[%c0_44, %c0_45, %c0_46] : memref<1x4x256xf32, #tpu.memory_space<vmem>>, vector<1x1x256xf32>
      %82 = vector.shape_cast %81 : vector<1x1x256xf32> to vector<1x256xf32>
      %83 = vector.shape_cast %80 : vector<1x256xf32> to vector<1x1x256xf32>
      tpu.vector_store %arg5[%c0_44, %c0_45, %c0_46], %83 {strides = array<i32>} : memref<1x4x256xf32, #tpu.memory_space<vmem>>, vector<1x1x256xf32>,
      %c0_47 = arith.constant 0 : index
      %c0_48 = arith.constant 0 : index
      %84 = vector.load %arg7[%c0_47, %c0_48] : memref<1x256xf32, #tpu.memory_space<vmem>>, vector<1x256xf32>
      %c0_49 = arith.constant 0 : index
      %c1 = arith.constant 1 : index
      %c0_50 = arith.constant 0 : index
      %85 = vector.load %arg5[%c0_49, %c1, %c0_50] : memref<1x4x256xf32, #tpu.memory_space<vmem>>, vector<1x1x256xf32>
      %86 = vector.shape_cast %85 : vector<1x1x256xf32> to vector<1x256xf32>
      %87 = vector.shape_cast %84 : vector<1x256xf32> to vector<1x1x256xf32>
      tpu.vector_store %arg5[%c0_49, %c1, %c0_50], %87 {strides = array<i32>} : memref<1x4x256xf32, #tpu.memory_space<vmem>>, vector<1x1x256xf32>,
      %c0_51 = arith.constant 0 : index
      %c0_52 = arith.constant 0 : index
      %88 = vector.load %arg8[%c0_51, %c0_52] : memref<1x256xf32, #tpu.memory_space<vmem>>, vector<1x256xf32>
      %c0_53 = arith.constant 0 : index
      %c2 = arith.constant 2 : index
      %c0_54 = arith.constant 0 : index
      %89 = vector.load %arg5[%c0_53, %c2, %c0_54] : memref<1x4x256xf32, #tpu.memory_space<vmem>>, vector<1x1x256xf32>
      %90 = vector.shape_cast %89 : vector<1x1x256xf32> to vector<1x256xf32>
      %91 = vector.shape_cast %88 : vector<1x256xf32> to vector<1x1x256xf32>
      tpu.vector_store %arg5[%c0_53, %c2, %c0_54], %91 {strides = array<i32>} : memref<1x4x256xf32, #tpu.memory_space<vmem>>, vector<1x1x256xf32>,
      %c0_55 = arith.constant 0 : index
      %c0_56 = arith.constant 0 : index
      %92 = vector.load %arg9[%c0_55, %c0_56] : memref<1x256xf32, #tpu.memory_space<vmem>>, vector<1x256xf32>
      %c0_57 = arith.constant 0 : index
      %c3 = arith.constant 3 : index
      %c0_58 = arith.constant 0 : index
      %93 = vector.load %arg5[%c0_57, %c3, %c0_58] : memref<1x4x256xf32, #tpu.memory_space<vmem>>, vector<1x1x256xf32>
      %94 = vector.shape_cast %93 : vector<1x1x256xf32> to vector<1x256xf32>
      %95 = vector.shape_cast %92 : vector<1x256xf32> to vector<1x1x256xf32>
      tpu.vector_store %arg5[%c0_57, %c3, %c0_58], %95 {strides = array<i32>} : memref<1x4x256xf32, #tpu.memory_space<vmem>>, vector<1x1x256xf32>,
    } else {
    }
    return
  }
  func.func @transform_0(%arg0: i32, %arg1: i32) -> (i32, i32) {
    %c2_i32 = arith.constant 2 : i32
    %0 = arith.muli %arg0, %c2_i32 : i32
    %1 = arith.addi %0, %arg1 : i32
    %c0_i32 = arith.constant 0 : i32
    %c0_i32_0 = arith.constant 0 : i32
    return %1, %c0_i32 : i32, i32
  }
  func.func @transform_1(%arg0: i32, %arg1: i32) -> (i32, i32) {
    %c2_i32 = arith.constant 2 : i32
    %0 = arith.muli %arg0, %c2_i32 : i32
    %1 = arith.addi %0, %arg1 : i32
    %c0_i32 = arith.constant 0 : i32
    %c0_i32_0 = arith.constant 0 : i32
    return %1, %c0_i32 : i32, i32
  }
  func.func @transform_2(%arg0: i32, %arg1: i32) -> (i32, i32) {
    %c2_i32 = arith.constant 2 : i32
    %0 = arith.muli %arg0, %c2_i32 : i32
    %1 = arith.addi %0, %arg1 : i32
    %c0_i32 = arith.constant 0 : i32
    %c0_i32_0 = arith.constant 0 : i32
    return %1, %c0_i32 : i32, i32
  }
  func.func @transform_3(%arg0: i32, %arg1: i32) -> (i32, i32, i32) {
    %c0_i32 = arith.constant 0 : i32
    %c0_i32_0 = arith.constant 0 : i32
    %c0_i32_1 = arith.constant 0 : i32
    return %arg0, %c0_i32, %c0_i32_0 : i32, i32, i32
  }
}

</mosaic_0001>

<llo_original>
// kernel: tpu_custom_call.1
$region0: #{tpu_custom_call.1}
  #allocation0 [shape = 'u32[]', space=smem, size = 0x4, offset = 0x4, fixed_abs, tag = 'smem constant byte address 0x4 - core index']
  #allocation1 [shape = 'u32[144,128]{1,0:T(1,128)}', space=vmem, size = 0x12000, scoped, tag = 'internal scratch']
  #allocation2 [shape = 'f32[1,256]{1,0:T(1,128)}', space=vmem, size = 0x400, scoped, tag = 'scratch operand']
  #allocation3 [shape = 'f32[1,256]{1,0:T(1,128)}', space=vmem, size = 0x400, scoped, tag = 'scratch operand']
  #allocation4 [shape = 'f32[1,256]{1,0:T(1,128)}', space=vmem, size = 0x400, scoped, tag = 'scratch operand']
  #allocation5 [shape = 'f32[1,256]{1,0:T(1,128)}', space=vmem, size = 0x400, scoped, tag = 'scratch operand']
  %s0 = inlined_call_operand.hbm [shape: f32[128,256], index: 0, kind: input, shape index: {}]
  %s1 = inlined_call_operand.hbm [shape: s8[128,256], index: 1, kind: input, shape index: {}]
  %s2 = inlined_call_operand.hbm [shape: f32[128,256], index: 2, kind: output, shape index: {0}]
  %s3 = inlined_call_operand.hbm [shape: f32[2,4,256], index: 3, kind: output, shape index: {1}]
  %4 = xla_tuple %s2, %s3
  %s5 = sld [smem:[#allocation0]]
  $region65: #{tpu_custom_call.1} parent=0
    _
  %s7 = ssub.s32 1, %s5
  %s8 = scalar_select 0, %s7, %s5
  $region1: #{tpu_custom_call.1} parent=0
    #allocation6 [shape = 'u8[65536]{0}', space=vmem, size = 0x10000, scoped, tag = 'input window, operand 0']
    #allocation7 [shape = 's32[2]{0}', space=sflag, size = 0x8, scoped, tag = 'scoped memory for tpu_custom_call.1']
    #allocation8 [shape = 's32[2]{0}', space=sflag, size = 0x8, scoped, tag = 'scoped memory for tpu_custom_call.1']
    #allocation9 [shape = 'u8[16384]{0}', space=vmem, size = 0x4000, scoped, tag = 'input window, operand 1']
    #allocation10 [shape = 's32[2]{0}', space=sflag, size = 0x8, scoped, tag = 'scoped memory for tpu_custom_call.1']
    #allocation11 [shape = 'u8[65536]{0}', space=vmem, size = 0x10000, scoped, tag = 'output window, operand 0']
    #allocation12 [shape = 'u8[8192]{0}', space=vmem, size = 0x2000, scoped, tag = 'output window, operand 1']
    #allocation13 [shape = 's32[2]{0}', space=sflag, size = 0x8, scoped, tag = 'scoped memory for tpu_custom_call.1']
    %9 = vsyncpa [#allocation7], 0
    %s10 = scalar_lea.sflag [#allocation7], 1
    %11 = vsyncpa %s10, 0
    %12 = vsyncpa [#allocation10], 0
    %s13 = scalar_lea.sflag [#allocation10], 1
    %14 = vsyncpa %s13, 0
    %15 = vsyncpa [#allocation8], 0
    %s16 = scalar_lea.sflag [#allocation8], 1
    %17 = vsyncpa %s16, 0
    %18 = vsyncpa [#allocation13], 0
    %s19 = scalar_lea.sflag [#allocation13], 1
    %20 = vsyncpa %s19, 0
    loop: start=0, step=1, limit=6
    $region2: #{tpu_custom_call.1} parent=1 // loop_pre_header
      _
    $region3: #{tpu_custom_call.1} parent=1 // loop_header
      %s22 = sphi 0, %s26
      %p23 = scmp.ge.s32.totalorder %s22, 6
      %s29 = sphi 0, %s41
      %s30 = sphi 0, %s37
      %s31 = sphi 0, %s29
      %s32 = sphi 0, %s30
      %s33 = sphi 0, %s31
      %s34 = sphi 0, %s32
      %s48 = sphi 0, %s50
      %s51 = sphi 0, %s48
      %s52 = sphi 0, %s51
      %s68 = sphi 0, %s52
      %s78 = sphi 0, %s80
      %s81 = sphi 0, %s78
      %s82 = sphi 0, %s81
      %s98 = sphi 0, %s82
      %s108 = sphi 0, %s110
      %s111 = sphi 0, %s108
      %s112 = sphi 0, %s111
      %s128 = sphi 0, %s112
      %s134 = sphi 0, %s136
      %s137 = sphi 0, %s134
      %s138 = sphi 0, %s137
      %s154 = sphi 0, %s138
    $region4: #{tpu_custom_call.1} parent=1 // loop_header_branch
      %25 = sbr.rel (%p23) target = $region8
    $region5: #{tpu_custom_call.1} parent=1 // loop_body
      %s27 = ssub.s32 %s22, 1
      %s28 = ssub.s32 %s22, 2
      %s35 = sadd.s32 1, %s30
      %p36 = scmp.ge.s32.totalorder %s35, 2
      %s37 = scalar_select %p36, 0, %s35
      %s38 = sadd.s32 1, %s29
      %s39 = scalar_select %p36, %s38, %s29
      %p40 = scmp.ge.s32.totalorder %s39, 2
      %s41 = scalar_select %p40, 0, %s39
      %s42 = smul.u32 %s29, 2
      %s43 = sadd.s32 %s42, %s30
      %s44 = smul.u32 %s41, 2
      %s45 = sadd.s32 %s44, %s37
      %s46 = ssub.s32 %s43, %s45
      %p47 = scmp.eq.s32.totalorder %s46, 0
      %s49 = sadd.s32 %s48, 1
      %s50 = scalar_select %p47, %s48, %s49
      %p53 = pneg %p47
      %p54 = scmp.eq.s32.totalorder %s22, 3
      %p55 = por %p53, %p54
      %p56 = scmp.ne.s32.totalorder %s48, %s51
      %p57 = scmp.eq.s32.totalorder %s22, 0
      %p58 = por %p56, %p57
      %p59 = scmp.ne.s32.totalorder %s48, %s51
      %p60 = scmp.eq.s32.totalorder %s27, 3
      %p61 = por %p59, %p60
      %p62 = scmp.ne.s32.totalorder %s51, %s52
      %p63 = scmp.eq.s32.totalorder %s27, 0
      %p64 = por %p62, %p63
      %p65 = scmp.ne.s32.totalorder %s51, %s52
      %p66 = scmp.eq.s32.totalorder %s28, 3
      %p67 = por %p65, %p66
      %p69 = scmp.ne.s32.totalorder %s52, %s68
      %p70 = scmp.eq.s32.totalorder %s28, 0
      %p71 = por %p69, %p70
      %s72 = smul.u32 %s29, 2
      %s73 = sadd.s32 %s72, %s30
      %s74 = smul.u32 %s41, 2
      %s75 = sadd.s32 %s74, %s37
      %s76 = ssub.s32 %s73, %s75
      %p77 = scmp.eq.s32.totalorder %s76, 0
      %s79 = sadd.s32 %s78, 1
      %s80 = scalar_select %p77, %s78, %s79
      %p83 = pneg %p77
      %p84 = scmp.eq.s32.totalorder %s22, 3
      %p85 = por %p83, %p84
      %p86 = scmp.ne.s32.totalorder %s78, %s81
      %p87 = scmp.eq.s32.totalorder %s22, 0
      %p88 = por %p86, %p87
      %p89 = scmp.ne.s32.totalorder %s78, %s81
      %p90 = scmp.eq.s32.totalorder %s27, 3
      %p91 = por %p89, %p90
      %p92 = scmp.ne.s32.totalorder %s81, %s82
      %p93 = scmp.eq.s32.totalorder %s27, 0
      %p94 = por %p92, %p93
      %p95 = scmp.ne.s32.totalorder %s81, %s82
      %p96 = scmp.eq.s32.totalorder %s28, 3
      %p97 = por %p95, %p96
      %p99 = scmp.ne.s32.totalorder %s82, %s98
      %p100 = scmp.eq.s32.totalorder %s28, 0
      %p101 = por %p99, %p100
      %s102 = smul.u32 %s29, 2
      %s103 = sadd.s32 %s102, %s30
      %s104 = smul.u32 %s41, 2
      %s105 = sadd.s32 %s104, %s37
      %s106 = ssub.s32 %s103, %s105
      %p107 = scmp.eq.s32.totalorder %s106, 0
      %s109 = sadd.s32 %s108, 1
      %s110 = scalar_select %p107, %s108, %s109
      %p113 = pneg %p107
      %p114 = scmp.eq.s32.totalorder %s22, 3
      %p115 = por %p113, %p114
      %p116 = scmp.ne.s32.totalorder %s108, %s111
      %p117 = scmp.eq.s32.totalorder %s22, 0
      %p118 = por %p116, %p117
      %p119 = scmp.ne.s32.totalorder %s108, %s111
      %p120 = scmp.eq.s32.totalorder %s27, 3
      %p121 = por %p119, %p120
      %p122 = scmp.ne.s32.totalorder %s111, %s112
      %p123 = scmp.eq.s32.totalorder %s27, 0
      %p124 = por %p122, %p123
      %p125 = scmp.ne.s32.totalorder %s111, %s112
      %p126 = scmp.eq.s32.totalorder %s28, 3
      %p127 = por %p125, %p126
      %p129 = scmp.ne.s32.totalorder %s112, %s128
      %p130 = scmp.eq.s32.totalorder %s28, 0
      %p131 = por %p129, %p130
      %s132 = ssub.s32 %s29, %s41
      %p133 = scmp.eq.s32.totalorder %s132, 0
      %s135 = sadd.s32 %s134, 1
      %s136 = scalar_select %p133, %s134, %s135
      %p139 = pneg %p133
      %p140 = scmp.eq.s32.totalorder %s22, 3
      %p141 = por %p139, %p140
      %p142 = scmp.ne.s32.totalorder %s134, %s137
      %p143 = scmp.eq.s32.totalorder %s22, 0
      %p144 = por %p142, %p143
      %p145 = scmp.ne.s32.totalorder %s134, %s137
      %p146 = scmp.eq.s32.totalorder %s27, 3
      %p147 = por %p145, %p146
      %p148 = scmp.ne.s32.totalorder %s137, %s138
      %p149 = scmp.eq.s32.totalorder %s27, 0
      %p150 = por %p148, %p149
      %p151 = scmp.ne.s32.totalorder %s137, %s138
      %p152 = scmp.eq.s32.totalorder %s28, 3
      %p153 = por %p151, %p152
      %p155 = scmp.ne.s32.totalorder %s138, %s154
      %p156 = scmp.eq.s32.totalorder %s28, 0
      %p157 = por %p155, %p156
      %p158 = scmp.le.s32.totalorder 1, %s22
      %p159 = scmp.lt.s32.totalorder %s22, 5
      %p160 = pnand %p158, %p159
      %p161 = pneg %p160
      // Predicated region
      $region9: #{tpu_custom_call.1} parent=5 // pred_check
        _
      $region10: #{tpu_custom_call.1} parent=5 // pred_check_branch
        %163 = sbr.rel (%p160) target = $region12
      $region11: #{tpu_custom_call.1} parent=5 // pred_region
        %s164 = ssub.s32 %s22, 1
      $region12: #{tpu_custom_call.1} parent=5 // pred_fallthru
        _
      %p165 = scmp.lt.s32.totalorder %s22, 4
      // Predicated region
      $region13: #{tpu_custom_call.1} parent=5 // pred_check
        %p166 = pneg %p165
      $region14: #{tpu_custom_call.1} parent=5 // pred_check_branch
        %168 = sbr.rel (%p166) target = $region16
      $region15: #{tpu_custom_call.1} parent=5 // pred_region
        // Predicated region
        $region17: #{tpu_custom_call.1} parent=15 // pred_check
          %p169 = pneg %p58
        $region18: #{tpu_custom_call.1} parent=15 // pred_check_branch
          %171 = sbr.rel (%p169) target = $region20
        $region19: #{tpu_custom_call.1} parent=15 // pred_region
          %s172 = sand.u32 %s48, 1
          %s173 = scalar_lea.sflag [#allocation7], %s172
          %s174 = sand.u32 %s48, 1
          %s175 = smul.addr %s174, 64
          %s176 = scalar_lea.vmem [#allocation6], %s175
          %s177 = smul.u32 %s29, 2
          %s178 = sadd.s32 %s177, %s30
          %s179 = smul.u32 4, %s178
          %s181 = ssub.s32 1024, 1024
          %182 = vsyncadd %s173, %s181
          %s183 = smul.addr %s179, 2
          %s184 = smul.addr %s183, 128
          %s185 = scalar_lea.hbm %s0, %s184
          %s186 = sshll.u32 %s176, 4
          %s187 = int_to_ptr.vmem [resolvable:$true] %s186
          %192 = dma.hbm_to_vmem [thread:$0]  %s185, 1024, %s187, %s173, 256, 256, 16
        $region20: #{tpu_custom_call.1} parent=15 // pred_fallthru
          _
        // Predicated region
        $region21: #{tpu_custom_call.1} parent=15 // pred_check
          %p193 = pneg %p88
        $region22: #{tpu_custom_call.1} parent=15 // pred_check_branch
          %195 = sbr.rel (%p193) target = $region24
        $region23: #{tpu_custom_call.1} parent=15 // pred_region
          %s196 = sand.u32 %s78, 1
          %s197 = scalar_lea.sflag [#allocation10], %s196
          %s198 = sand.u32 %s78, 1
          %s199 = smul.addr %s198, 16
          %s200 = scalar_lea.vmem [#allocation9], %s199
          %s201 = smul.u32 %s29, 2
          %s202 = sadd.s32 %s201, %s30
          %s204 = ssub.s32 256, 256
          %205 = vsyncadd %s197, %s204
          %s206 = smul.addr %s202, 2
          %s207 = smul.addr %s206, 128
          %s208 = scalar_lea.hbm %s1, %s207
          %s210 = sshll.u32 %s200, 4
          %s211 = int_to_ptr.vmem [resolvable:$true] %s210
          %213 = dma.hbm_to_vmem [thread:$0]  %s208, 256, %s211, %s197
        $region24: #{tpu_custom_call.1} parent=15 // pred_fallthru
          _
      $region16: #{tpu_custom_call.1} parent=5 // pred_fallthru
        _
      %p214 = scmp.le.s32.totalorder 1, %s22
      %p215 = scmp.lt.s32.totalorder %s22, 5
      %p216 = pnand %p214, %p215
      %p217 = pneg %p216
      // Predicated region
      $region25: #{tpu_custom_call.1} parent=5 // pred_check
        _
      $region26: #{tpu_custom_call.1} parent=5 // pred_check_branch
        %219 = sbr.rel (%p216) target = $region28
      $region27: #{tpu_custom_call.1} parent=5 // pred_region
        %s220 = ssub.s32 %s22, 1
        %s221 = sand.u32 %s51, 1
        %s222 = scalar_lea.sflag [#allocation7], %s221
        %s223 = sand.u32 %s51, 1
        %s224 = smul.addr %s223, 64
        %s225 = scalar_lea.vmem [#allocation6], %s224
        // Predicated region
        $region29: #{tpu_custom_call.1} parent=27 // pred_check
          %p226 = pneg %p64
        $region30: #{tpu_custom_call.1} parent=27 // pred_check_branch
          %228 = sbr.rel (%p226) target = $region32
        $region31: #{tpu_custom_call.1} parent=27 // pred_region
          %229 = dma.done %s222, 1024
        $region32: #{tpu_custom_call.1} parent=27 // pred_fallthru
          _
        %s230 = sand.u32 %s81, 1
        %s231 = scalar_lea.sflag [#allocation10], %s230
        %s232 = sand.u32 %s81, 1
        %s233 = smul.addr %s232, 16
        %s234 = scalar_lea.vmem [#allocation9], %s233
        // Predicated region
        $region33: #{tpu_custom_call.1} parent=27 // pred_check
          %p235 = pneg %p94
        $region34: #{tpu_custom_call.1} parent=27 // pred_check_branch
          %237 = sbr.rel (%p235) target = $region36
        $region35: #{tpu_custom_call.1} parent=27 // pred_region
          %238 = dma.done %s231, 256
        $region36: #{tpu_custom_call.1} parent=27 // pred_fallthru
          _
        %s239 = sand.u32 %s51, 1
        %s240 = scalar_lea.sflag [#allocation7], %s239
        %s241 = sand.u32 %s51, 1
        %s242 = smul.addr %s241, 64
        %s243 = scalar_lea.vmem [#allocation6], %s242
        %p244 = pneg %p64
        %p245 = pneg %p61
        %s246 = sand.u32 %s81, 1
        %s247 = scalar_lea.sflag [#allocation10], %s246
        %s248 = sand.u32 %s81, 1
        %s249 = smul.addr %s248, 16
        %s250 = scalar_lea.vmem [#allocation9], %s249
        %p251 = pneg %p94
        %p252 = pneg %p91
        %p253 = pneg %p124
        %p254 = pneg %p121
        %s255 = sand.u32 %s111, 1
        %s256 = scalar_lea.sflag [#allocation8], %s255
        %s257 = sand.u32 %s111, 1
        %s258 = smul.addr %s257, 64
        %s259 = scalar_lea.vmem [#allocation11], %s258
        %p260 = pneg %p150
        %p261 = pneg %p147
        %s262 = sand.u32 %s137, 1
        %s263 = scalar_lea.sflag [#allocation13], %s262
        %s264 = sand.u32 %s137, 1
        %s265 = smul.addr %s264, 8
        %s266 = scalar_lea.vmem [#allocation12], %s265
        %s267 = smul.u32 %s31, 2
        %s268 = sadd.s32 %s267, %s32
        %s269 = smul.u32 4, %s268
        %s270 = smul.u32 %s31, 2
        %s271 = sadd.s32 %s270, %s32
        %s272 = smul.u32 %s31, 2
        %s273 = sadd.s32 %s272, %s32
        %s274 = smul.u32 4, %s273
        %p275 = scmp.eq.s32.totalorder %s32, 0
        // Predicated region
        $region37: #{tpu_custom_call.1} parent=27 // pred_check
          %p276 = pneg %p275
        $region38: #{tpu_custom_call.1} parent=27 // pred_check_branch
          %278 = sbr.rel (%p276) target = $region40
        $region39: #{tpu_custom_call.1} parent=27 // pred_region
          %v279 = vlaneseq
          %vm280 = vcmp.ge.s32.totalorder %v279, 0
          %vm281 = vcmp.lt.s32.totalorder %v279, 256
          %vm282 = vmand %vm280, %vm281
          %283 = vst.msk [vmem:[#allocation2] sm:$0x3] %vm282, 0.0
          %284 = vst.msk [vmem:[#allocation3] sm:$0x3] %vm282, 0.0
          %285 = vst.msk [vmem:[#allocation4] sm:$0x3] %vm282, 0.0
          %286 = vst.msk [vmem:[#allocation5] sm:$0x3] %vm282, 0.0
        $region40: #{tpu_custom_call.1} parent=27 // pred_fallthru
          _
        %v287 = vld [vmem:[%s225] sm:$0xff]
        %v288 = vld [vmem:[%s225 + $0x8] sm:$0xff]
        %v289 = vld [vmem:[%s225 + $0x10] sm:$0xff]
        %v290 = vld [vmem:[%s225 + $0x18] sm:$0xff]
        %v291 = vld [vmem:[%s225 + $0x20] sm:$0xff]
        %v292 = vld [vmem:[%s225 + $0x28] sm:$0xff]
        %v293 = vld [vmem:[%s225 + $0x30] sm:$0xff]
        %v294 = vld [vmem:[%s225 + $0x38] sm:$0xff]
        %v295 = vsub.f32 0.0, %v287
        %v296 = vsub.f32 0.0, %v288
        %v297 = vsub.f32 0.0, %v289
        %v298 = vsub.f32 0.0, %v290
        %v299 = vsub.f32 0.0, %v291
        %v300 = vsub.f32 0.0, %v292
        %v301 = vsub.f32 0.0, %v293
        %v302 = vsub.f32 0.0, %v294
        %v303 = vmul.f32 %v295, 1.442695
        %v304 = vpow.pop %v303
        %v305 = vmul.f32 %v296, 1.442695
        %v306 = vpow.pop %v305
        %v307 = vmul.f32 %v297, 1.442695
        %v308 = vpow.pop %v307
        %v309 = vmul.f32 %v298, 1.442695
        %v310 = vpow.pop %v309
        %v311 = vmul.f32 %v299, 1.442695
        %v312 = vpow.pop %v311
        %v313 = vmul.f32 %v300, 1.442695
        %v314 = vpow.pop %v313
        %v315 = vmul.f32 %v301, 1.442695
        %v316 = vpow.pop %v315
        %v317 = vmul.f32 %v302, 1.442695
        %v318 = vpow.pop %v317
        %v319 = vadd.f32 %v304, 1.0
        %v320 = vadd.f32 %v306, 1.0
        %v321 = vadd.f32 %v308, 1.0
        %v322 = vadd.f32 %v310, 1.0
        %v323 = vadd.f32 %v312, 1.0
        %v324 = vadd.f32 %v314, 1.0
        %v325 = vadd.f32 %v316, 1.0
        %v326 = vadd.f32 %v318, 1.0
        %v327 = vrcp.pop %v319
        %v328 = vrcp.pop %v320
        %v329 = vrcp.pop %v321
        %v330 = vrcp.pop %v322
        %v331 = vrcp.pop %v323
        %v332 = vrcp.pop %v324
        %v333 = vrcp.pop %v325
        %v334 = vrcp.pop %v326
        %335 = vst [vmem:[%s259] sm:$0xff] %v327
        %336 = vst [vmem:[%s259 + $0x8] sm:$0xff] %v328
        %337 = vst [vmem:[%s259 + $0x10] sm:$0xff] %v329
        %338 = vst [vmem:[%s259 + $0x18] sm:$0xff] %v330
        %339 = vst [vmem:[%s259 + $0x20] sm:$0xff] %v331
        %340 = vst [vmem:[%s259 + $0x28] sm:$0xff] %v332
        %341 = vst [vmem:[%s259 + $0x30] sm:$0xff] %v333
        %342 = vst [vmem:[%s259 + $0x38] sm:$0xff] %v334
        %v343 = vlog2.pop %v319
        %v344 = vmul.f32 %v343, 0.6931472
        %v345 = vlog2.pop %v320
        %v346 = vmul.f32 %v345, 0.6931472
        %v347 = vlog2.pop %v321
        %v348 = vmul.f32 %v347, 0.6931472
        %v349 = vlog2.pop %v322
        %v350 = vmul.f32 %v349, 0.6931472
        %v351 = vlog2.pop %v323
        %v352 = vmul.f32 %v351, 0.6931472
        %v353 = vlog2.pop %v324
        %v354 = vmul.f32 %v353, 0.6931472
        %v355 = vlog2.pop %v325
        %v356 = vmul.f32 %v355, 0.6931472
        %v357 = vlog2.pop %v326
        %v358 = vmul.f32 %v357, 0.6931472
        %v359 = vsub.f32 0.0, %v344
        %v360 = vsub.f32 0.0, %v346
        %v361 = vsub.f32 0.0, %v348
        %v362 = vsub.f32 0.0, %v350
        %v363 = vsub.f32 0.0, %v352
        %v364 = vsub.f32 0.0, %v354
        %v365 = vsub.f32 0.0, %v356
        %v366 = vsub.f32 0.0, %v358
        %v367 = vsub.f32 0.0, %v359
        %v368 = vsub.f32 0.0, %v360
        %v369 = vsub.f32 0.0, %v361
        %v370 = vsub.f32 0.0, %v362
        %v371 = vsub.f32 0.0, %v363
        %v372 = vsub.f32 0.0, %v364
        %v373 = vsub.f32 0.0, %v365
        %v374 = vsub.f32 0.0, %v366
        %v375 = vmin.f32 %v367, 100.0
        %v376 = vmin.f32 %v368, 100.0
        %v377 = vmin.f32 %v369, 100.0
        %v378 = vmin.f32 %v370, 100.0
        %v379 = vmin.f32 %v371, 100.0
        %v380 = vmin.f32 %v372, 100.0
        %v381 = vmin.f32 %v373, 100.0
        %v382 = vmin.f32 %v374, 100.0
        %v383 = vsub.f32 %v287, %v359
        %v384 = vsub.f32 %v288, %v360
        %v385 = vsub.f32 %v289, %v361
        %v386 = vsub.f32 %v290, %v362
        %v387 = vsub.f32 %v291, %v363
        %v388 = vsub.f32 %v292, %v364
        %v389 = vsub.f32 %v293, %v365
        %v390 = vsub.f32 %v294, %v366
        %v391 = vmin.f32 %v383, 100.0
        %v392 = vmin.f32 %v384, 100.0
        %v393 = vmin.f32 %v385, 100.0
        %v394 = vmin.f32 %v386, 100.0
        %v395 = vmin.f32 %v387, 100.0
        %v396 = vmin.f32 %v388, 100.0
        %v397 = vmin.f32 %v389, 100.0
        %v398 = vmin.f32 %v390, 100.0
        %v399 = vld [vmem:[%s234] sm:$0xff]
        %v400 = vld [vmem:[%s234 + $0x8] sm:$0xff]
        %v401 = vunpack.c.0.s8 %v399
        %v402 = vunpack.c.0.s8 %v400
        %v403 = vunpack.c.1.s8 %v399
        %v404 = vunpack.c.1.s8 %v400
        %v405 = vunpack.c.2.s8 %v399
        %v406 = vunpack.c.2.s8 %v400
        %v407 = vunpack.c.3.s8 %v399
        %v408 = vunpack.c.3.s8 %v400
        %v409 = vand.u32 %v401, 1
        %v410 = vand.u32 %v402, 1
        %v411 = vand.u32 %v403, 1
        %v412 = vand.u32 %v404, 1
        %v413 = vand.u32 %v405, 1
        %v414 = vand.u32 %v406, 1
        %v415 = vand.u32 %v407, 1
        %v416 = vand.u32 %v408, 1
        %vm417 = vcmp.gt.s32.totalorder %v409, 0
        %vm418 = vcmp.gt.s32.totalorder %v410, 0
        %vm419 = vcmp.gt.s32.totalorder %v411, 0
        %vm420 = vcmp.gt.s32.totalorder %v412, 0
        %vm421 = vcmp.gt.s32.totalorder %v413, 0
        %vm422 = vcmp.gt.s32.totalorder %v414, 0
        %vm423 = vcmp.gt.s32.totalorder %v415, 0
        %vm424 = vcmp.gt.s32.totalorder %v416, 0
        %v425 = vand.u32 %v401, 2
        %v426 = vand.u32 %v402, 2
        %v427 = vand.u32 %v403, 2
        %v428 = vand.u32 %v404, 2
        %v429 = vand.u32 %v405, 2
        %v430 = vand.u32 %v406, 2
        %v431 = vand.u32 %v407, 2
        %v432 = vand.u32 %v408, 2
        %vm433 = vcmp.gt.s32.totalorder %v425, 0
        %vm434 = vcmp.gt.s32.totalorder %v426, 0
        %vm435 = vcmp.gt.s32.totalorder %v427, 0
        %vm436 = vcmp.gt.s32.totalorder %v428, 0
        %vm437 = vcmp.gt.s32.totalorder %v429, 0
        %vm438 = vcmp.gt.s32.totalorder %v430, 0
        %vm439 = vcmp.gt.s32.totalorder %v431, 0
        %vm440 = vcmp.gt.s32.totalorder %v432, 0
        %v441 = vand.u32 %v401, 4
        %v442 = vand.u32 %v402, 4
        %v443 = vand.u32 %v403, 4
        %v444 = vand.u32 %v404, 4
        %v445 = vand.u32 %v405, 4
        %v446 = vand.u32 %v406, 4
        %v447 = vand.u32 %v407, 4
        %v448 = vand.u32 %v408, 4
        %vm449 = vcmp.gt.s32.totalorder %v441, 0
        %vm450 = vcmp.gt.s32.totalorder %v442, 0
        %vm451 = vcmp.gt.s32.totalorder %v443, 0
        %vm452 = vcmp.gt.s32.totalorder %v444, 0
        %vm453 = vcmp.gt.s32.totalorder %v445, 0
        %vm454 = vcmp.gt.s32.totalorder %v446, 0
        %vm455 = vcmp.gt.s32.totalorder %v447, 0
        %vm456 = vcmp.gt.s32.totalorder %v448, 0
        %v457 = vand.u32 %v401, 8
        %v458 = vand.u32 %v402, 8
        %v459 = vand.u32 %v403, 8
        %v460 = vand.u32 %v404, 8
        %v461 = vand.u32 %v405, 8
        %v462 = vand.u32 %v406, 8
        %v463 = vand.u32 %v407, 8
        %v464 = vand.u32 %v408, 8
        %vm465 = vcmp.gt.s32.totalorder %v457, 0
        %vm466 = vcmp.gt.s32.totalorder %v458, 0
        %vm467 = vcmp.gt.s32.totalorder %v459, 0
        %vm468 = vcmp.gt.s32.totalorder %v460, 0
        %vm469 = vcmp.gt.s32.totalorder %v461, 0
        %vm470 = vcmp.gt.s32.totalorder %v462, 0
        %vm471 = vcmp.gt.s32.totalorder %v463, 0
        %vm472 = vcmp.gt.s32.totalorder %v464, 0
        %v473 = vand.u32 %v401, 16
        %v474 = vand.u32 %v402, 16
        %v475 = vand.u32 %v403, 16
        %v476 = vand.u32 %v404, 16
        %v477 = vand.u32 %v405, 16
        %v478 = vand.u32 %v406, 16
        %v479 = vand.u32 %v407, 16
        %v480 = vand.u32 %v408, 16
        %vm481 = vcmp.gt.s32.totalorder %v473, 0
        %vm482 = vcmp.gt.s32.totalorder %v474, 0
        %vm483 = vcmp.gt.s32.totalorder %v475, 0
        %vm484 = vcmp.gt.s32.totalorder %v476, 0
        %vm485 = vcmp.gt.s32.totalorder %v477, 0
        %vm486 = vcmp.gt.s32.totalorder %v478, 0
        %vm487 = vcmp.gt.s32.totalorder %v479, 0
        %vm488 = vcmp.gt.s32.totalorder %v480, 0
        %v489 = vsel %vm433, %v375, %v391
        %v490 = vsel %vm434, %v376, %v392
        %v491 = vsel %vm435, %v377, %v393
        %v492 = vsel %vm436, %v378, %v394
        %v493 = vsel %vm437, %v379, %v395
        %v494 = vsel %vm438, %v380, %v396
        %v495 = vsel %vm439, %v381, %v397
        %v496 = vsel %vm440, %v382, %v398
        %v497 = vsel %vm417, %v489, 0.0
        %v498 = vsel %vm418, %v490, 0.0
        %v499 = vsel %vm419, %v491, 0.0
        %v500 = vsel %vm420, %v492, 0.0
        %v501 = vsel %vm421, %v493, 0.0
        %v502 = vsel %vm422, %v494, 0.0
        %v503 = vsel %vm423, %v495, 0.0
        %v504 = vsel %vm424, %v496, 0.0
        %v505 = vsel %vm465, %v375, %v391
        %v506 = vsel %vm466, %v376, %v392
        %v507 = vsel %vm467, %v377, %v393
        %v508 = vsel %vm468, %v378, %v394
        %v509 = vsel %vm469, %v379, %v395
        %v510 = vsel %vm470, %v380, %v396
        %v511 = vsel %vm471, %v381, %v397
        %v512 = vsel %vm472, %v382, %v398
        %v513 = vsel %vm449, %v505, 0.0
        %v514 = vsel %vm450, %v506, 0.0
        %v515 = vsel %vm451, %v507, 0.0
        %v516 = vsel %vm452, %v508, 0.0
        %v517 = vsel %vm453, %v509, 0.0
        %v518 = vsel %vm454, %v510, 0.0
        %v519 = vsel %vm455, %v511, 0.0
        %v520 = vsel %vm456, %v512, 0.0
        %521 = vrot.lane.b32.xlu0 %v327, 32
        %v522 = vpop.permute.xlu0 %521
        %523 = vrot.lane.b32.xlu0 %v329, 32
        %v524 = vpop.permute.xlu0 %523
        %525 = vrot.lane.b32.xlu0 %v331, 32
        %v526 = vpop.permute.xlu0 %525
        %527 = vrot.lane.b32.xlu0 %v333, 32
        %v528 = vpop.permute.xlu0 %527
        %529 = vrot.lane.b32.xlu0 %v328, 32
        %v530 = vpop.permute.xlu0 %529
        %531 = vrot.lane.b32.xlu0 %v330, 32
        %v532 = vpop.permute.xlu0 %531
        %533 = vrot.lane.b32.xlu0 %v332, 32
        %v534 = vpop.permute.xlu0 %533
        %535 = vrot.lane.b32.xlu0 %v334, 32
        %v536 = vpop.permute.xlu0 %535
        %v537 = vlaneseq
        %v538 = vand.u32 %v537, 127
        %vm539 = vcmp.lt.s32.totalorder %v538, 32
        %v540 = vsel %vm539, %v522, %v530
        %v541 = vsel %vm539, %v524, %v532
        %v542 = vsel %vm539, %v526, %v534
        %v543 = vsel %vm539, %v528, %v536
        %v544 = vsel %vm539, %v530, %v522
        %v545 = vsel %vm539, %v532, %v524
        %v546 = vsel %vm539, %v534, %v526
        %v547 = vsel %vm539, %v536, %v528
        %v548 = vsub.f32 %v327, %v544
        %v549 = vsub.f32 %v328, %v540
        %v550 = vsub.f32 %v329, %v545
        %v551 = vsub.f32 %v330, %v541
        %v552 = vsub.f32 %v331, %v546
        %v553 = vsub.f32 %v332, %v542
        %v554 = vsub.f32 %v333, %v547
        %v555 = vsub.f32 %v334, %v543
        %v556 = vsel %vm481, %v548, 0.0
        %v557 = vsel %vm482, %v549, 0.0
        %v558 = vsel %vm483, %v550, 0.0
        %v559 = vsel %vm484, %v551, 0.0
        %v560 = vsel %vm485, %v552, 0.0
        %v561 = vsel %vm486, %v553, 0.0
        %v562 = vsel %vm487, %v554, 0.0
        %v563 = vsel %vm488, %v555, 0.0
        %v564 = vld [vmem:[#allocation2] sm:$0x3]
        %v565 = vadd.f32 %v497, %v499
        %v566 = vadd.f32 %v565, %v501
        %v567 = vadd.f32 %v566, %v503
        %v568 = vrot.slane %v567, 4
        %v569 = vadd.f32 %v567, %v568
        %v570 = vrot.slane %v569, 2
        %v571 = vadd.f32 %v569, %v570
        %v572 = vrot.slane %v571, 1
        %v573 = vadd.f32 %v571, %v572
        %v574 = vadd.f32 %v498, %v500
        %v575 = vadd.f32 %v574, %v502
        %v576 = vadd.f32 %v575, %v504
        %v577 = vrot.slane %v576, 4
        %v578 = vadd.f32 %v576, %v577
        %v579 = vrot.slane %v578, 2
        %v580 = vadd.f32 %v578, %v579
        %v581 = vrot.slane %v580, 1
        %v582 = vadd.f32 %v580, %v581
        %v585 = vcombine.low %v573, %v582
        %v587 = vunpack.c.l.s4 1966171168
        %v588 = vunpack.c.0.s8 %v587
        %v589 = vlaneseq
        %v590 = vshrl.u32 %v589, 7
        %v591 = vsub.s32 %v588, %v590
        %v592 = vrot.slane %v585, %v591
        %v594 = vunpack.c.l.s4 1966171168
        %v595 = vunpack.c.0.s8 %v594
        %v596 = vlaneseq
        %v597 = vshrl.u32 %v596, 7
        %v598 = vsub.s32 %v595, %v597
        %v599 = vrot.slane %v592, %v598
        %v601 = vadd.f32 %v564, %v599
        %v602 = vlaneseq
        %vm603 = vcmp.ge.s32.totalorder %v602, 0
        %vm604 = vcmp.lt.s32.totalorder %v602, 256
        %vm605 = vmand %vm603, %vm604
        %606 = vst.msk [vmem:[#allocation2] sm:$0x3] %vm605, %v601
        %v607 = vld [vmem:[#allocation3] sm:$0x3]
        %v608 = vadd.f32 %v513, %v515
        %v609 = vadd.f32 %v608, %v517
        %v610 = vadd.f32 %v609, %v519
        %v611 = vrot.slane %v610, 4
        %v612 = vadd.f32 %v610, %v611
        %v613 = vrot.slane %v612, 2
        %v614 = vadd.f32 %v612, %v613
        %v615 = vrot.slane %v614, 1
        %v616 = vadd.f32 %v614, %v615
        %v617 = vadd.f32 %v514, %v516
        %v618 = vadd.f32 %v617, %v518
        %v619 = vadd.f32 %v618, %v520
        %v620 = vrot.slane %v619, 4
        %v621 = vadd.f32 %v619, %v620
        %v622 = vrot.slane %v621, 2
        %v623 = vadd.f32 %v621, %v622
        %v624 = vrot.slane %v623, 1
        %v625 = vadd.f32 %v623, %v624
        %v628 = vcombine.low %v616, %v625
        %v630 = vunpack.c.l.s4 1966171168
        %v631 = vunpack.c.0.s8 %v630
        %v632 = vlaneseq
        %v633 = vshrl.u32 %v632, 7
        %v634 = vsub.s32 %v631, %v633
        %v635 = vrot.slane %v628, %v634
        %v637 = vunpack.c.l.s4 1966171168
        %v638 = vunpack.c.0.s8 %v637
        %v639 = vlaneseq
        %v640 = vshrl.u32 %v639, 7
        %v641 = vsub.s32 %v638, %v640
        %v642 = vrot.slane %v635, %v641
        %v644 = vadd.f32 %v607, %v642
        %645 = vst.msk [vmem:[#allocation3] sm:$0x3] %vm605, %v644
        %v646 = vld [vmem:[#allocation4] sm:$0x3]
        %v647 = vand.u32 2147483647, %v556
        %v648 = vand.u32 2147483647, %v557
        %v649 = vand.u32 2147483647, %v558
        %v650 = vand.u32 2147483647, %v559
        %v651 = vand.u32 2147483647, %v560
        %v652 = vand.u32 2147483647, %v561
        %v653 = vand.u32 2147483647, %v562
        %v654 = vand.u32 2147483647, %v563
        %v655 = vadd.f32 %v647, %v649
        %v656 = vadd.f32 %v655, %v651
        %v657 = vadd.f32 %v656, %v653
        %v658 = vrot.slane %v657, 4
        %v659 = vadd.f32 %v657, %v658
        %v660 = vrot.slane %v659, 2
        %v661 = vadd.f32 %v659, %v660
        %v662 = vrot.slane %v661, 1
        %v663 = vadd.f32 %v661, %v662
        %v664 = vadd.f32 %v648, %v650
        %v665 = vadd.f32 %v664, %v652
        %v666 = vadd.f32 %v665, %v654
        %v667 = vrot.slane %v666, 4
        %v668 = vadd.f32 %v666, %v667
        %v669 = vrot.slane %v668, 2
        %v670 = vadd.f32 %v668, %v669
        %v671 = vrot.slane %v670, 1
        %v672 = vadd.f32 %v670, %v671
        %v675 = vcombine.low %v663, %v672
        %v677 = vunpack.c.l.s4 1966171168
        %v678 = vunpack.c.0.s8 %v677
        %v679 = vlaneseq
        %v680 = vshrl.u32 %v679, 7
        %v681 = vsub.s32 %v678, %v680
        %v682 = vrot.slane %v675, %v681
        %v684 = vunpack.c.l.s4 1966171168
        %v685 = vunpack.c.0.s8 %v684
        %v686 = vlaneseq
        %v687 = vshrl.u32 %v686, 7
        %v688 = vsub.s32 %v685, %v687
        %v689 = vrot.slane %v682, %v688
        %v691 = vadd.f32 %v646, %v689
        %692 = vst.msk [vmem:[#allocation4] sm:$0x3] %vm605, %v691
        %v693 = vld [vmem:[#allocation5] sm:$0x3]
        %v694 = vmul.f32 %v556, %v556
        %v695 = vmul.f32 %v557, %v557
        %v696 = vmul.f32 %v558, %v558
        %v697 = vmul.f32 %v559, %v559
        %v698 = vmul.f32 %v560, %v560
        %v699 = vmul.f32 %v561, %v561
        %v700 = vmul.f32 %v562, %v562
        %v701 = vmul.f32 %v563, %v563
        %v702 = vadd.f32 %v694, %v696
        %v703 = vadd.f32 %v702, %v698
        %v704 = vadd.f32 %v703, %v700
        %v705 = vrot.slane %v704, 4
        %v706 = vadd.f32 %v704, %v705
        %v707 = vrot.slane %v706, 2
        %v708 = vadd.f32 %v706, %v707
        %v709 = vrot.slane %v708, 1
        %v710 = vadd.f32 %v708, %v709
        %v711 = vadd.f32 %v695, %v697
        %v712 = vadd.f32 %v711, %v699
        %v713 = vadd.f32 %v712, %v701
        %v714 = vrot.slane %v713, 4
        %v715 = vadd.f32 %v713, %v714
        %v716 = vrot.slane %v715, 2
        %v717 = vadd.f32 %v715, %v716
        %v718 = vrot.slane %v717, 1
        %v719 = vadd.f32 %v717, %v718
        %v722 = vcombine.low %v710, %v719
        %v724 = vunpack.c.l.s4 1966171168
        %v725 = vunpack.c.0.s8 %v724
        %v726 = vlaneseq
        %v727 = vshrl.u32 %v726, 7
        %v728 = vsub.s32 %v725, %v727
        %v729 = vrot.slane %v722, %v728
        %v731 = vunpack.c.l.s4 1966171168
        %v732 = vunpack.c.0.s8 %v731
        %v733 = vlaneseq
        %v734 = vshrl.u32 %v733, 7
        %v735 = vsub.s32 %v732, %v734
        %v736 = vrot.slane %v729, %v735
        %v738 = vadd.f32 %v693, %v736
        %739 = vst.msk [vmem:[#allocation5] sm:$0x3] %vm605, %v738
        %p740 = scmp.eq.s32.totalorder %s32, 1
        // Predicated region
        $region41: #{tpu_custom_call.1} parent=27 // pred_check
          %p741 = pneg %p740
        $region42: #{tpu_custom_call.1} parent=27 // pred_check_branch
          %743 = sbr.rel (%p741) target = $region44
        $region43: #{tpu_custom_call.1} parent=27 // pred_region
          %v744 = vld [vmem:[#allocation2] sm:$0x3]
          %745 = vst.msk [vmem:[%s266] ss:$4 sm:$0x3] %vm605, %v744
          %v746 = vld [vmem:[#allocation3] sm:$0x3]
          %s747 = scalar_lea.vmem %s266, 1 [#allocation12]
          %748 = vst.msk [vmem:[%s747] ss:$4 sm:$0x3] %vm605, %v746
          %v749 = vld [vmem:[#allocation4] sm:$0x3]
          %s750 = scalar_lea.vmem %s266, 2 [#allocation12]
          %751 = vst.msk [vmem:[%s750] ss:$4 sm:$0x3] %vm605, %v749
          %v752 = vld [vmem:[#allocation5] sm:$0x3]
          %s753 = scalar_lea.vmem %s266, 3 [#allocation12]
          %754 = vst.msk [vmem:[%s753] ss:$4 sm:$0x3] %vm605, %v752
        $region44: #{tpu_custom_call.1} parent=27 // pred_fallthru
          _
        %s755 = sand.u32 %s111, 1
        %s756 = scalar_lea.sflag [#allocation8], %s755
        %s757 = sand.u32 %s111, 1
        %s758 = smul.addr %s757, 64
        %s759 = scalar_lea.vmem [#allocation11], %s758
        %s760 = sand.u32 %s137, 1
        %s761 = scalar_lea.sflag [#allocation13], %s760
        %s762 = sand.u32 %s137, 1
        %s763 = smul.addr %s762, 8
        %s764 = scalar_lea.vmem [#allocation12], %s763
        // Predicated region
        $region45: #{tpu_custom_call.1} parent=27 // pred_check
          %p765 = pneg %p121
        $region46: #{tpu_custom_call.1} parent=27 // pred_check_branch
          %767 = sbr.rel (%p765) target = $region48
        $region47: #{tpu_custom_call.1} parent=27 // pred_region
          %s768 = smul.u32 %s31, 2
          %s769 = sadd.s32 %s768, %s32
          %s770 = smul.u32 4, %s769
          %s772 = ssub.s32 1024, 1024
          %773 = vsyncadd %s756, %s772
          %s774 = smul.addr %s770, 2
          %s775 = smul.addr %s774, 128
          %s776 = scalar_lea.hbm %s2, %s775
          %s777 = sshll.u32 %s759, 4
          %s778 = int_to_ptr.vmem [resolvable:$true] %s777
          %783 = dma.vmem_to_hbm [thread:$0]  %s778, 1024, %s776, %s756, 256, 256, 16
        $region48: #{tpu_custom_call.1} parent=27 // pred_fallthru
          _
        // Predicated region
        $region49: #{tpu_custom_call.1} parent=27 // pred_check
          %p784 = pneg %p147
        $region50: #{tpu_custom_call.1} parent=27 // pred_check_branch
          %786 = sbr.rel (%p784) target = $region52
        $region51: #{tpu_custom_call.1} parent=27 // pred_region
          %s788 = ssub.s32 128, 128
          %789 = vsyncadd %s761, %s788
          %s790 = smul.addr %s31, 2
          %s791 = smul.addr %s790, 64
          %s792 = scalar_lea.hbm %s3, %s791
          %s794 = sshll.u32 %s764, 4
          %s795 = int_to_ptr.vmem [resolvable:$true] %s794
          %797 = dma.vmem_to_hbm [thread:$0]  %s795, 128, %s792, %s761
        $region52: #{tpu_custom_call.1} parent=27 // pred_fallthru
          _
      $region28: #{tpu_custom_call.1} parent=5 // pred_fallthru
        _
      %p798 = scmp.le.s32.totalorder 2, %s22
      // Predicated region
      $region53: #{tpu_custom_call.1} parent=5 // pred_check
        %p799 = pneg %p798
      $region54: #{tpu_custom_call.1} parent=5 // pred_check_branch
        %801 = sbr.rel (%p799) target = $region56
      $region55: #{tpu_custom_call.1} parent=5 // pred_region
        %s802 = ssub.s32 %s22, 2
        // Predicated region
        $region57: #{tpu_custom_call.1} parent=55 // pred_check
          %p803 = pneg %p127
        $region58: #{tpu_custom_call.1} parent=55 // pred_check_branch
          %805 = sbr.rel (%p803) target = $region60
        $region59: #{tpu_custom_call.1} parent=55 // pred_region
          %s806 = sand.u32 %s112, 1
          %s807 = scalar_lea.sflag [#allocation8], %s806
          %s808 = sand.u32 %s112, 1
          %s809 = smul.addr %s808, 64
          %s810 = scalar_lea.vmem [#allocation11], %s809
          %811 = dma.done %s807, 1024
        $region60: #{tpu_custom_call.1} parent=55 // pred_fallthru
          _
        // Predicated region
        $region61: #{tpu_custom_call.1} parent=55 // pred_check
          %p812 = pneg %p153
        $region62: #{tpu_custom_call.1} parent=55 // pred_check_branch
          %814 = sbr.rel (%p812) target = $region64
        $region63: #{tpu_custom_call.1} parent=55 // pred_region
          %s815 = sand.u32 %s138, 1
          %s816 = scalar_lea.sflag [#allocation13], %s815
          %s817 = sand.u32 %s138, 1
          %s818 = smul.addr %s817, 8
          %s819 = scalar_lea.vmem [#allocation12], %s818
          %820 = dma.done %s816, 128
        $region64: #{tpu_custom_call.1} parent=55 // pred_fallthru
          _
      $region56: #{tpu_custom_call.1} parent=5 // pred_fallthru
        _
    $region6: #{tpu_custom_call.1} parent=1 // loop_footer
      %s26 = sadd.s32 1, %s22
    $region7: #{tpu_custom_call.1} parent=1 // loop_footer_branch
      %21 = sbr.rel target = $region3
    $region8: #{tpu_custom_call.1} parent=1 // loop_exit
      _
    %821 = vsyncpa [#allocation7], 1
    %s822 = scalar_lea.sflag [#allocation7], 1
    %823 = vsyncpa %s822, 1
    %824 = vsyncpa [#allocation10], 1
    %s825 = scalar_lea.sflag [#allocation10], 1
    %826 = vsyncpa %s825, 1
    %827 = vsyncpa [#allocation8], 1
    %s828 = scalar_lea.sflag [#allocation8], 1
    %829 = vsyncpa %s828, 1
    %830 = vsyncpa [#allocation13], 1
    %s831 = scalar_lea.sflag [#allocation13], 1
    %832 = vsyncpa %s831, 1

</llo_original>
